<compile_context>
chip_gen: v7x
topology: tpu7x:2x2x1
jax: 0.10.0
libtpu: 0.0.40
codegen_flags: <defaults>
</compile_context>

<pallas_src>
import functools

import jax
import jax.numpy as jnp
from jax import lax
from jax.experimental import pallas as pl
from jax.experimental.pallas import tpu as pltpu


def _round_up(x, m):
    return ((x + m - 1) // m) * m


def _sinkhorn_kernel(logits_ref, out_ref, *, num_iters, inv_epsilon,
                     n_b, n_k, rows, cols):
    b_pad, k_pad = out_ref.shape
    padded = (b_pad != rows) or (k_pad != cols)

    # exp(logits/eps), numerically stabilized by subtracting the per-prototype
    # (axis-0) max — a per-column scale that the first per-prototype
    # normalization cancels exactly.
    x = logits_ref[...].astype(jnp.float32) * inv_epsilon
    if padded:
        row_ids = lax.broadcasted_iota(jnp.int32, (b_pad, k_pad), 0)
        col_ids = lax.broadcasted_iota(jnp.int32, (b_pad, k_pad), 1)
        mask = (row_ids < rows) & (col_ids < cols)
        x = jnp.where(mask, x, -jnp.inf)
        col_max = jnp.max(x, axis=0, keepdims=True)
        q = jnp.where(mask, jnp.exp(x - col_max), 0.0)   # pads stay exactly 0
    else:
        col_max = jnp.max(x, axis=0, keepdims=True)
        q = jnp.exp(x - col_max)
    out_ref[...] = q

    # Note: the redundant global `Q /= sum(Q)` is dropped (cancelled by the
    # first per-prototype normalization), and the final `Q *= B` is folded by
    # omitting the 1/B factor in the last iteration.
    for it in range(num_iters):
        q = out_ref[...]

        # per-prototype normalization (torch: sum over dim=1 of Q, then /K)
        col_sum = jnp.sum(q, axis=0, keepdims=True)          # (1, k_pad)
        if padded:
            col_scale = jnp.where(col_sum > 0.0, 1.0 / (col_sum * n_k), 0.0)
        else:
            # exact reciprocal on the tiny vector (approx=True would also work
            # if ~1e-4 relative error is acceptable downstream).
            col_scale = pl.reciprocal(col_sum * n_k, approx=False)
        q = q * col_scale                                     # full pass 1

        # per-sample normalization (torch: sum over dim=0 of Q, then /B)
        row_sum = jnp.sum(q, axis=1, keepdims=True)           # (b_pad, 1)
        row_den = row_sum if it == num_iters - 1 else row_sum * n_b
        if padded:
            row_scale = jnp.where(row_sum > 0.0, 1.0 / row_den, 0.0)
        else:
            row_scale = pl.reciprocal(row_den, approx=False)
        out_ref[...] = q * row_scale                          # full pass 2


def sinkhorn_knopp(logits, num_iters=3, epsilon=0.05):
    """Pallas TPU implementation of SinkhornKnopp.forward.

    logits: (B, K) array. Returns the (B, K) assignment matrix, float32.
    """
    b, k = logits.shape
    b_pad = _round_up(b, 8)      # f32 sublane tile
    k_pad = _round_up(k, 128)    # lane tile -> unmasked, lane-dense stores

    x = logits.astype(jnp.float32)
    if (b_pad, k_pad) != (b, k):
        x = jnp.pad(x, ((0, b_pad - b), (0, k_pad - k)))

    kernel = functools.partial(
        _sinkhorn_kernel,
        num_iters=int(num_iters),
        inv_epsilon=1.0 / float(epsilon),
        n_b=float(b),
        n_k=float(k),
        rows=b,
        cols=k,
    )

    arr_bytes = b_pad * k_pad * 4
    vmem_limit = int(min(100 * 1024 * 1024, max(32 * 1024 * 1024, 6 * arr_bytes)))

    out = pl.pallas_call(
        kernel,
        out_shape=jax.ShapeDtypeStruct((b_pad, k_pad), jnp.float32),
        # Empty grid: single invocation, whole (padded) array resident in VMEM,
        # no pipeline double-buffering.
        in_specs=[pl.BlockSpec(memory_space=pltpu.MemorySpace.VMEM)],
        out_specs=pl.BlockSpec(memory_space=pltpu.MemorySpace.VMEM),
        input_output_aliases={0: 0},   # iterate in place; reuse the HBM buffer
        compiler_params=pltpu.CompilerParams(vmem_limit_bytes=vmem_limit),
    )(x)

    if (b_pad, k_pad) != (b, k):
        out = out[:b, :k]
    return out


def _reference(logits, num_iters=3, epsilon=0.05):
    # Faithful pure-JAX transcription of the PyTorch forward.
    q = jnp.exp(logits.astype(jnp.float32) / epsilon).T   # (K, B)
    k, b = q.shape
    q = q / jnp.sum(q)
    for _ in range(num_iters):
        q = q / jnp.sum(q, axis=1, keepdims=True)
        q = q / k
        q = q / jnp.sum(q, axis=0, keepdims=True)
        q = q / b
    q = q * b
    return q.T


if __name__ == "__main__":
    key = jax.random.PRNGKey(0)
    B, K = 8, 32   # batch of 8 samples, 32 prototypes
    logits = jax.random.normal(key, (B, K), dtype=jnp.float32)

    # Compute the reference first (the kernel aliases its input buffer).
    ref = _reference(logits, num_iters=3, epsilon=0.05)

    out = sinkhorn_knopp(logits, num_iters=3, epsilon=0.05)
    out = jax.block_until_ready(out)

    assert out.shape == (B, K)
    assert jnp.allclose(out, ref, atol=1e-5, rtol=1e-5), (
        "mismatch vs reference: max abs err "
        f"{float(jnp.max(jnp.abs(out - ref)))}"
    )

    print("KERNEL_OK")
</pallas_src>

<mosaic_0001>
module attributes {stable_mosaic.version = 11 : i64} {
  func.func @_sinkhorn_kernel(%arg0: memref<8x128xf32, #tpu.memory_space<vmem>>, %arg1: memref<8x128xf32, #tpu.memory_space<vmem>>) attributes {dimension_semantics = [], scalar_prefetch = 0 : i64, scratch_operands = 0 : i64, tpu.core_type = #tpu.core_type<tc>} {
    %c0 = arith.constant 0 : index
    %c0_0 = arith.constant 0 : index
    %0 = vector.load %arg0[%c0, %c0_0] : memref<8x128xf32, #tpu.memory_space<vmem>>, vector<8x128xf32>
    %cst = arith.constant 2.000000e+01 : f32
    %1 = vector.broadcast %cst : f32 to vector<8x128xf32>
    %2 = arith.mulf %0, %1 : vector<8x128xf32>
    %3 = tpu.iota {dimensions = array<i32: 0>} : vector<8x128xi32>
    %4 = tpu.iota {dimensions = array<i32: 1>} : vector<8x128xi32>
    %c8_i32 = arith.constant 8 : i32
    %5 = vector.broadcast %c8_i32 : i32 to vector<8x128xi32>
    %6 = arith.cmpi slt, %3, %5 : vector<8x128xi32>
    %c32_i32 = arith.constant 32 : i32
    %7 = vector.broadcast %c32_i32 : i32 to vector<8x128xi32>
    %8 = arith.cmpi slt, %4, %7 : vector<8x128xi32>
    %9 = arith.andi %6, %8 : vector<8x128xi1>
    %cst_1 = arith.constant 0xFF800000 : f32
    %10 = vector.broadcast %cst_1 : f32 to vector<8x128xf32>
    %11 = arith.select %9, %2, %10 : vector<8x128xi1>, vector<8x128xf32>
    %cst_2 = arith.constant dense<0xFF800000> : vector<128xf32>
    %12 = vector.multi_reduction <maximumf>, %11, %cst_2 [0] : vector<8x128xf32> to vector<128xf32>
    %13 = vector.shape_cast %12 : vector<128xf32> to vector<1x128xf32>
    %14 = vector.broadcast %13 : vector<1x128xf32> to vector<8x128xf32>
    %15 = arith.subf %11, %14 : vector<8x128xf32>
    %16 = math.exp %15 : vector<8x128xf32>
    %cst_3 = arith.constant 0.000000e+00 : f32
    %17 = vector.broadcast %cst_3 : f32 to vector<8x128xf32>
    %18 = arith.select %9, %16, %17 : vector<8x128xi1>, vector<8x128xf32>
    %c0_4 = arith.constant 0 : index
    %c0_5 = arith.constant 0 : index
    %19 = vector.load %arg1[%c0_4, %c0_5] : memref<8x128xf32, #tpu.memory_space<vmem>>, vector<8x128xf32>
    tpu.vector_store %arg1[%c0_4, %c0_5], %18 {strides = array<i32>} : memref<8x128xf32, #tpu.memory_space<vmem>>, vector<8x128xf32>,
    %c0_6 = arith.constant 0 : index
    %c0_7 = arith.constant 0 : index
    %20 = vector.load %arg1[%c0_6, %c0_7] : memref<8x128xf32, #tpu.memory_space<vmem>>, vector<8x128xf32>
    %cst_8 = arith.constant dense<0.000000e+00> : vector<128xf32>
    %21 = vector.multi_reduction <add>, %20, %cst_8 [0] : vector<8x128xf32> to vector<128xf32>
    %22 = vector.shape_cast %21 : vector<128xf32> to vector<1x128xf32>
    %cst_9 = arith.constant 0.000000e+00 : f32
    %23 = vector.broadcast %cst_9 : f32 to vector<1x128xf32>
    %24 = arith.cmpf ogt, %22, %23 : vector<1x128xf32>
    %cst_10 = arith.constant 3.200000e+01 : f32
    %25 = vector.broadcast %cst_10 : f32 to vector<1x128xf32>
    %26 = arith.mulf %22, %25 : vector<1x128xf32>
    %cst_11 = arith.constant 1.000000e+00 : f32
    %27 = vector.broadcast %cst_11 : f32 to vector<1x128xf32>
    %28 = arith.divf %27, %26 : vector<1x128xf32>
    %cst_12 = arith.constant 0.000000e+00 : f32
    %29 = vector.broadcast %cst_12 : f32 to vector<1x128xf32>
    %30 = arith.select %24, %28, %29 : vector<1x128xi1>, vector<1x128xf32>
    %31 = vector.broadcast %30 : vector<1x128xf32> to vector<8x128xf32>
    %32 = arith.mulf %20, %31 : vector<8x128xf32>
    %cst_13 = arith.constant dense<0.000000e+00> : vector<8xf32>
    %33 = vector.multi_reduction <add>, %32, %cst_13 [1] : vector<8x128xf32> to vector<8xf32>
    %34 = vector.shape_cast %33 : vector<8xf32> to vector<8x1xf32>
    %cst_14 = arith.constant 8.000000e+00 : f32
    %35 = vector.broadcast %cst_14 : f32 to vector<8x1xf32>
    %36 = arith.mulf %34, %35 : vector<8x1xf32>
    %cst_15 = arith.constant 0.000000e+00 : f32
    %37 = vector.broadcast %cst_15 : f32 to vector<8x1xf32>
    %38 = arith.cmpf ogt, %34, %37 : vector<8x1xf32>
    %cst_16 = arith.constant 1.000000e+00 : f32
    %39 = vector.broadcast %cst_16 : f32 to vector<8x1xf32>
    %40 = arith.divf %39, %36 : vector<8x1xf32>
    %cst_17 = arith.constant 0.000000e+00 : f32
    %41 = vector.broadcast %cst_17 : f32 to vector<8x1xf32>
    %42 = arith.select %38, %40, %41 : vector<8x1xi1>, vector<8x1xf32>
    %43 = vector.broadcast %42 : vector<8x1xf32> to vector<8x128xf32>
    %44 = arith.mulf %32, %43 : vector<8x128xf32>
    %c0_18 = arith.constant 0 : index
    %c0_19 = arith.constant 0 : index
    %45 = vector.load %arg1[%c0_18, %c0_19] : memref<8x128xf32, #tpu.memory_space<vmem>>, vector<8x128xf32>
    tpu.vector_store %arg1[%c0_18, %c0_19], %44 {strides = array<i32>} : memref<8x128xf32, #tpu.memory_space<vmem>>, vector<8x128xf32>,
    %c0_20 = arith.constant 0 : index
    %c0_21 = arith.constant 0 : index
    %46 = vector.load %arg1[%c0_20, %c0_21] : memref<8x128xf32, #tpu.memory_space<vmem>>, vector<8x128xf32>
    %cst_22 = arith.constant dense<0.000000e+00> : vector<128xf32>
    %47 = vector.multi_reduction <add>, %46, %cst_22 [0] : vector<8x128xf32> to vector<128xf32>
    %48 = vector.shape_cast %47 : vector<128xf32> to vector<1x128xf32>
    %cst_23 = arith.constant 0.000000e+00 : f32
    %49 = vector.broadcast %cst_23 : f32 to vector<1x128xf32>
    %50 = arith.cmpf ogt, %48, %49 : vector<1x128xf32>
    %cst_24 = arith.constant 3.200000e+01 : f32
    %51 = vector.broadcast %cst_24 : f32 to vector<1x128xf32>
    %52 = arith.mulf %48, %51 : vector<1x128xf32>
    %cst_25 = arith.constant 1.000000e+00 : f32
    %53 = vector.broadcast %cst_25 : f32 to vector<1x128xf32>
    %54 = arith.divf %53, %52 : vector<1x128xf32>
    %cst_26 = arith.constant 0.000000e+00 : f32
    %55 = vector.broadcast %cst_26 : f32 to vector<1x128xf32>
    %56 = arith.select %50, %54, %55 : vector<1x128xi1>, vector<1x128xf32>
    %57 = vector.broadcast %56 : vector<1x128xf32> to vector<8x128xf32>
    %58 = arith.mulf %46, %57 : vector<8x128xf32>
    %cst_27 = arith.constant dense<0.000000e+00> : vector<8xf32>
    %59 = vector.multi_reduction <add>, %58, %cst_27 [1] : vector<8x128xf32> to vector<8xf32>
    %60 = vector.shape_cast %59 : vector<8xf32> to vector<8x1xf32>
    %cst_28 = arith.constant 8.000000e+00 : f32
    %61 = vector.broadcast %cst_28 : f32 to vector<8x1xf32>
    %62 = arith.mulf %60, %61 : vector<8x1xf32>
    %cst_29 = arith.constant 0.000000e+00 : f32
    %63 = vector.broadcast %cst_29 : f32 to vector<8x1xf32>
    %64 = arith.cmpf ogt, %60, %63 : vector<8x1xf32>
    %cst_30 = arith.constant 1.000000e+00 : f32
    %65 = vector.broadcast %cst_30 : f32 to vector<8x1xf32>
    %66 = arith.divf %65, %62 : vector<8x1xf32>
    %cst_31 = arith.constant 0.000000e+00 : f32
    %67 = vector.broadcast %cst_31 : f32 to vector<8x1xf32>
    %68 = arith.select %64, %66, %67 : vector<8x1xi1>, vector<8x1xf32>
    %69 = vector.broadcast %68 : vector<8x1xf32> to vector<8x128xf32>
    %70 = arith.mulf %58, %69 : vector<8x128xf32>
    %c0_32 = arith.constant 0 : index
    %c0_33 = arith.constant 0 : index
    %71 = vector.load %arg1[%c0_32, %c0_33] : memref<8x128xf32, #tpu.memory_space<vmem>>, vector<8x128xf32>
    tpu.vector_store %arg1[%c0_32, %c0_33], %70 {strides = array<i32>} : memref<8x128xf32, #tpu.memory_space<vmem>>, vector<8x128xf32>,
    %c0_34 = arith.constant 0 : index
    %c0_35 = arith.constant 0 : index
    %72 = vector.load %arg1[%c0_34, %c0_35] : memref<8x128xf32, #tpu.memory_space<vmem>>, vector<8x128xf32>
    %cst_36 = arith.constant dense<0.000000e+00> : vector<128xf32>
    %73 = vector.multi_reduction <add>, %72, %cst_36 [0] : vector<8x128xf32> to vector<128xf32>
    %74 = vector.shape_cast %73 : vector<128xf32> to vector<1x128xf32>
    %cst_37 = arith.constant 0.000000e+00 : f32
    %75 = vector.broadcast %cst_37 : f32 to vector<1x128xf32>
    %76 = arith.cmpf ogt, %74, %75 : vector<1x128xf32>
    %cst_38 = arith.constant 3.200000e+01 : f32
    %77 = vector.broadcast %cst_38 : f32 to vector<1x128xf32>
    %78 = arith.mulf %74, %77 : vector<1x128xf32>
    %cst_39 = arith.constant 1.000000e+00 : f32
    %79 = vector.broadcast %cst_39 : f32 to vector<1x128xf32>
    %80 = arith.divf %79, %78 : vector<1x128xf32>
    %cst_40 = arith.constant 0.000000e+00 : f32
    %81 = vector.broadcast %cst_40 : f32 to vector<1x128xf32>
    %82 = arith.select %76, %80, %81 : vector<1x128xi1>, vector<1x128xf32>
    %83 = vector.broadcast %82 : vector<1x128xf32> to vector<8x128xf32>
    %84 = arith.mulf %72, %83 : vector<8x128xf32>
    %cst_41 = arith.constant dense<0.000000e+00> : vector<8xf32>
    %85 = vector.multi_reduction <add>, %84, %cst_41 [1] : vector<8x128xf32> to vector<8xf32>
    %86 = vector.shape_cast %85 : vector<8xf32> to vector<8x1xf32>
    %cst_42 = arith.constant 0.000000e+00 : f32
    %87 = vector.broadcast %cst_42 : f32 to vector<8x1xf32>
    %88 = arith.cmpf ogt, %86, %87 : vector<8x1xf32>
    %cst_43 = arith.constant 1.000000e+00 : f32
    %89 = vector.broadcast %cst_43 : f32 to vector<8x1xf32>
    %90 = arith.divf %89, %86 : vector<8x1xf32>
    %cst_44 = arith.constant 0.000000e+00 : f32
    %91 = vector.broadcast %cst_44 : f32 to vector<8x1xf32>
    %92 = arith.select %88, %90, %91 : vector<8x1xi1>, vector<8x1xf32>
    %93 = vector.broadcast %92 : vector<8x1xf32> to vector<8x128xf32>
    %94 = arith.mulf %84, %93 : vector<8x128xf32>
    %c0_45 = arith.constant 0 : index
    %c0_46 = arith.constant 0 : index
    %95 = vector.load %arg1[%c0_45, %c0_46] : memref<8x128xf32, #tpu.memory_space<vmem>>, vector<8x128xf32>
    tpu.vector_store %arg1[%c0_45, %c0_46], %94 {strides = array<i32>} : memref<8x128xf32, #tpu.memory_space<vmem>>, vector<8x128xf32>,
    return
  }
}

</mosaic_0001>

<llo_original>
// kernel: tpu_custom_call.1
$region0: #{tpu_custom_call.1}
  #allocation0 [shape = 'u32[]', space=smem, size = 0x4, offset = 0x4, fixed_abs, tag = 'smem constant byte address 0x4 - core index']
  #allocation1 [shape = 'u32[144,128]{1,0:T(1,128)}', space=vmem, size = 0x12000, scoped, tag = 'internal scratch']
  %s0 = inlined_call_operand.hbm [shape: f32[8,128], index: 0, kind: input, shape index: {}, may-alias: {0,1}]
  %s1 = inlined_call_operand.hbm [shape: f32[8,128], index: 1, kind: output, shape index: {}, may-alias: {0,1}]
  %s2 = sld [smem:[#allocation0]]
  $region18: #{tpu_custom_call.1} parent=0
    _
  %s4 = ssub.s32 1, %s2
  %s5 = scalar_select 0, %s4, %s2
  $region1: #{tpu_custom_call.1} parent=0
    #allocation2 [shape = 'u8[4096]{0}', space=vmem, size = 0x1000, scoped, tag = 'input window, operand 0, single buffered']
    #allocation3 [shape = 's32[1]{0}', space=sflag, size = 0x4, scoped, tag = 'scoped memory for tpu_custom_call.1']
    #allocation4 [shape = 's32[1]{0}', space=sflag, size = 0x4, scoped, tag = 'scoped memory for tpu_custom_call.1']
    #allocation5 [shape = 'u8[4096]{0}', space=vmem, size = 0x1000, scoped, tag = 'output window, operand 0, single buffered']
    %6 = vsyncpa [#allocation3], 0
    %7 = vsyncpa [#allocation4], 0
    // Predicated region
    $region2: #{tpu_custom_call.1} parent=1 // pred_check
      _
    $region3: #{tpu_custom_call.1} parent=1 // pred_check_branch
      %9 = sbr.rel (0) target = $region5
    $region4: #{tpu_custom_call.1} parent=1 // pred_region
      %s11 = ssub.s32 128, 128
      %12 = vsyncadd [#allocation3], %s11
      %s14 = sshll.u32 [#allocation2], 4
      %s15 = int_to_ptr.vmem [resolvable:$true] %s14
      %17 = dma.hbm_to_vmem [thread:$0]  %s0, 128, %s15, [#allocation3]
    $region5: #{tpu_custom_call.1} parent=1 // pred_fallthru
      _
    // Predicated region
    $region6: #{tpu_custom_call.1} parent=1 // pred_check
      _
    $region7: #{tpu_custom_call.1} parent=1 // pred_check_branch
      %19 = sbr.rel (0) target = $region9
    $region8: #{tpu_custom_call.1} parent=1 // pred_region
      %20 = dma.done [#allocation3], 128
    $region9: #{tpu_custom_call.1} parent=1 // pred_fallthru
      _
    %v21 = vld [vmem:[#allocation2] sm:$0xff]
    %v22 = vmul.f32 %v21, 20.0
    %v23 = vlaneseq
    %v24 = vshrl.u32 %v23, 7
    %v25 = vlaneseq
    %v26 = vand.u32 %v25, 127
    %vm27 = vcmp.lt.s32.totalorder %v24, 8
    %vm28 = vcmp.lt.s32.totalorder %v26, 32
    %vm29 = vmand %vm27, %vm28
    %v30 = vsel %vm29, %v22, -inf
    %v31 = vrot.slane %v30, 4
    %v32 = vmax.f32 %v30, %v31
    %v33 = vrot.slane %v32, 2
    %v34 = vmax.f32 %v32, %v33
    %v35 = vrot.slane %v34, 1
    %v36 = vmax.f32 %v34, %v35
    %v37 = vsub.f32 %v30, %v36
    %v38 = vmul.f32 %v37, 1.442695
    %v39 = vpow.pop %v38
    %v40 = vsel %vm29, %v39, 0.0
    %41 = vst [vmem:[#allocation5] sm:$0xff] %v40
    %v42 = vld [vmem:[#allocation5] sm:$0xff]
    %v43 = vrot.slane %v42, 4
    %v44 = vadd.f32 %v42, %v43
    %v45 = vrot.slane %v44, 2
    %v46 = vadd.f32 %v44, %v45
    %v47 = vrot.slane %v46, 1
    %v48 = vadd.f32 %v46, %v47
    %vm49 = vcmp.gt.f32.partialorder %v48, 0.0
    %v50 = vmul.f32 %v48, 32.0
    %v51 = vrcp.pop %v50
    %v52 = vmul.f32 1.0, %v51
    %v53 = vsel %vm49, %v52, 0.0
    %v54 = vmul.f32 %v42, %v53
    %55 = vadd.xlane.f32.xlu0 %v54
    %v56 = vpop.xlane.xlu0 %55
    %v57 = vmul.f32 %v56, 8.0
    %vm58 = vcmp.gt.f32.partialorder %v56, 0.0
    %v59 = vrcp.pop %v57
    %v60 = vmul.f32 1.0, %v59
    %v61 = vsel %vm58, %v60, 0.0
    %v62 = vmul.f32 %v54, %v61
    %63 = vst [vmem:[#allocation5] sm:$0xff] %v62
    %v64 = vld [vmem:[#allocation5] sm:$0xff]
    %v65 = vrot.slane %v64, 4
    %v66 = vadd.f32 %v64, %v65
    %v67 = vrot.slane %v66, 2
    %v68 = vadd.f32 %v66, %v67
    %v69 = vrot.slane %v68, 1
    %v70 = vadd.f32 %v68, %v69
    %vm71 = vcmp.gt.f32.partialorder %v70, 0.0
    %v72 = vmul.f32 %v70, 32.0
    %v73 = vrcp.pop %v72
    %v74 = vmul.f32 1.0, %v73
    %v75 = vsel %vm71, %v74, 0.0
    %v76 = vmul.f32 %v64, %v75
    %77 = vadd.xlane.f32.xlu0 %v76
    %v78 = vpop.xlane.xlu0 %77
    %v79 = vmul.f32 %v78, 8.0
    %vm80 = vcmp.gt.f32.partialorder %v78, 0.0
    %v81 = vrcp.pop %v79
    %v82 = vmul.f32 1.0, %v81
    %v83 = vsel %vm80, %v82, 0.0
    %v84 = vmul.f32 %v76, %v83
    %85 = vst [vmem:[#allocation5] sm:$0xff] %v84
    %v86 = vld [vmem:[#allocation5] sm:$0xff]
    %v87 = vrot.slane %v86, 4
    %v88 = vadd.f32 %v86, %v87
    %v89 = vrot.slane %v88, 2
    %v90 = vadd.f32 %v88, %v89
    %v91 = vrot.slane %v90, 1
    %v92 = vadd.f32 %v90, %v91
    %vm93 = vcmp.gt.f32.partialorder %v92, 0.0
    %v94 = vmul.f32 %v92, 32.0
    %v95 = vrcp.pop %v94
    %v96 = vmul.f32 1.0, %v95
    %v97 = vsel %vm93, %v96, 0.0
    %v98 = vmul.f32 %v86, %v97
    %99 = vadd.xlane.f32.xlu0 %v98
    %v100 = vpop.xlane.xlu0 %99
    %vm101 = vcmp.gt.f32.partialorder %v100, 0.0
    %v102 = vrcp.pop %v100
    %v103 = vmul.f32 1.0, %v102
    %v104 = vsel %vm101, %v103, 0.0
    %v105 = vmul.f32 %v98, %v104
    %106 = vst [vmem:[#allocation5] sm:$0xff] %v105
    // Predicated region
    $region10: #{tpu_custom_call.1} parent=1 // pred_check
      _
    $region11: #{tpu_custom_call.1} parent=1 // pred_check_branch
      %108 = sbr.rel (0) target = $region13
    $region12: #{tpu_custom_call.1} parent=1 // pred_region
      %s110 = ssub.s32 128, 128
      %111 = vsyncadd [#allocation4], %s110
      %s113 = sshll.u32 [#allocation5], 4
      %s114 = int_to_ptr.vmem [resolvable:$true] %s113
      %116 = dma.vmem_to_hbm [thread:$0]  %s114, 128, %s1, [#allocation4]
    $region13: #{tpu_custom_call.1} parent=1 // pred_fallthru
      _
    // Predicated region
    $region14: #{tpu_custom_call.1} parent=1 // pred_check
      _
    $region15: #{tpu_custom_call.1} parent=1 // pred_check_branch
      %118 = sbr.rel (0) target = $region17
    $region16: #{tpu_custom_call.1} parent=1 // pred_region
      %119 = dma.done [#allocation4], 128
    $region17: #{tpu_custom_call.1} parent=1 // pred_fallthru
      _
    %120 = vsyncpa [#allocation3], 1
    %121 = vsyncpa [#allocation4], 1

</llo_original>
